<compile_context>
chip_gen: v5e
topology: v5e:2x2
jax: 0.10.0
libtpu: 0.0.40
codegen_flags: <defaults>
</compile_context>

<pallas_src>
import jax
import jax.numpy as jnp
from jax.experimental import pallas as pl
from jax.experimental.pallas import tpu as pltpu

_PACK = 128  # original rows packed per lane-dense row (one full f32 lane span)


def _linear_ar_kernel(x_ref, w_ref, b_ref, o_ref):
    # x_ref: (tb, 128*lag) VMEM  -- tb lane-dense rows, each holding 128 samples
    # w_ref: (128*lag, 128) VMEM -- block-diagonal weight, resident across grid steps
    # b_ref: (1,) SMEM           -- bias scalar
    # o_ref: (tb, 128) VMEM      -- lane-dense output (one prediction per lane)
    y = jnp.dot(x_ref[...], w_ref[...], preferred_element_type=jnp.float32)  # MXU
    o_ref[...] = y + b_ref[0]                                                # VPU add


def _block_diag_weight(weight, lag):
    # Wbd[j*lag + k, j] = w[k]; zero elsewhere.  Shape (128*lag, 128), ~64*lag KiB.
    w = weight.reshape(lag).astype(jnp.float32)
    eye = jnp.eye(_PACK, dtype=jnp.float32)
    return (eye[:, None, :] * w[None, :, None]).reshape(_PACK * lag, _PACK)


def linear_ar_forward(x, weight, bias, *, block_rows=None, xla_batch_threshold=128):
    """Pallas forward pass of LinearARModel: y = x @ W^T + b.

    Args:
      x:      (batch, lag) float32
      weight: (1, lag)     float32  (nn.Linear(lag, 1).weight)
      bias:   (1,)         float32  (nn.Linear(lag, 1).bias)
      block_rows: original rows per grid step (rounded down to a multiple of 1024);
        default targets ~4 MiB of packed x per step.
      xla_batch_threshold: below this batch size, skip the kernel dispatch entirely.
    Returns:
      (batch, 1) float32
    """
    x = x.astype(jnp.float32)
    weight = weight.astype(jnp.float32)
    bias = bias.reshape(1).astype(jnp.float32)

    batch, lag = x.shape
    assert weight.shape == (1, lag)

    # Tiny batches: the pallas_call launch costs more than the work.
    if batch < xla_batch_threshold:
        return x @ weight.T + bias

    # ---- Wrapper-side lane-dense repack (free contiguous reshape) -----------------
    pad_batch = ((batch + _PACK - 1) // _PACK) * _PACK
    if pad_batch != batch:
        x = jnp.pad(x, ((0, pad_batch - batch), (0, 0)))
    n_tiles = pad_batch // _PACK
    packed_cols = _PACK * lag                       # always a multiple of 128
    x_packed = x.reshape(n_tiles, packed_cols)      # row t = rows t*128..t*128+127

    w_bd = _block_diag_weight(weight, lag)

    # ---- Batch tiling: ~4 MiB of packed x per grid step, tile rows multiple of 8 --
    row_bytes = packed_cols * 4
    if block_rows is None:
        block_tiles = (4 * 1024 * 1024) // row_bytes
    else:
        block_tiles = block_rows // _PACK
    block_tiles = max(8, (block_tiles // 8) * 8)
    if n_tiles <= block_tiles:
        tb = n_tiles                                # full-array block (single step)
    else:
        tb = block_tiles                            # ragged last tile: masked writes
    grid = (pl.cdiv(n_tiles, tb),)

    cost = pl.CostEstimate(
        flops=2 * pad_batch * lag,
        transcendentals=0,
        bytes_accessed=4 * (pad_batch * lag + pad_batch + packed_cols * _PACK),
    )

    y_packed = pl.pallas_call(
        _linear_ar_kernel,
        out_shape=jax.ShapeDtypeStruct((n_tiles, _PACK), jnp.float32),
        grid=grid,
        in_specs=[
            pl.BlockSpec((tb, packed_cols), lambda i: (i, 0)),      # x tile
            pl.BlockSpec((packed_cols, _PACK), lambda i: (0, 0)),   # resident weight
            pl.BlockSpec(memory_space=pltpu.MemorySpace.SMEM),      # bias scalar
        ],
        out_specs=pl.BlockSpec((tb, _PACK), lambda i: (i, 0)),
        compiler_params=pltpu.CompilerParams(
            dimension_semantics=("parallel",),       # v7x megacore splits grid steps
            vmem_limit_bytes=32 * 1024 * 1024,       # safe on v5e/v6e/v7x
        ),
        cost_estimate=cost,
    )(x_packed, w_bd, bias)

    # (tiles, 128) -> (pad_batch, 1), drop padded rows.
    return y_packed.reshape(pad_batch, 1)[:batch]


if __name__ == "__main__":
    lag = 16

    key = jax.random.PRNGKey(0)
    kx1, kx2, kx3, kw, kb = jax.random.split(key, 5)

    # Deterministic parameter init mimicking nn.Linear's U(-1/sqrt(lag), 1/sqrt(lag)).
    bound = 1.0 / (lag ** 0.5)
    weight = jax.random.uniform(kw, (1, lag), jnp.float32, -bound, bound)
    bias = jax.random.uniform(kb, (1,), jnp.float32, -bound, bound)

    # Multi-step pipelined Pallas path (small data, several grid steps).
    x1 = jax.random.normal(kx1, (4096, lag), jnp.float32)
    y1 = linear_ar_forward(x1, weight, bias, block_rows=1024)   # 32 tiles, grid=(4,)
    jax.block_until_ready(y1)
    ref1 = x1 @ weight.T + bias
    assert y1.shape == (4096, 1)
    assert jnp.allclose(y1, ref1, atol=1e-5, rtol=1e-5)

    # Pallas path with batch not a multiple of 128 (wrapper pads, slices back).
    x2 = jax.random.normal(kx2, (200, lag), jnp.float32)
    y2 = linear_ar_forward(x2, weight, bias)
    jax.block_until_ready(y2)
    ref2 = x2 @ weight.T + bias
    assert y2.shape == (200, 1)
    assert jnp.allclose(y2, ref2, atol=1e-5, rtol=1e-5)

    # Tiny-batch XLA fallback (no kernel dispatch).
    x3 = jax.random.normal(kx3, (8, lag), jnp.float32)
    y3 = linear_ar_forward(x3, weight, bias)
    jax.block_until_ready(y3)
    ref3 = x3 @ weight.T + bias
    assert y3.shape == (8, 1)
    assert jnp.allclose(y3, ref3, atol=1e-5, rtol=1e-5)

    print("KERNEL_OK")
</pallas_src>

<mosaic_0001>
module attributes {stable_mosaic.version = 11 : i64} {
  func.func @_linear_ar_kernel(%arg0: i32, %arg1: memref<8x2048xf32, #tpu.memory_space<vmem>>, %arg2: memref<2048x128xf32, #tpu.memory_space<vmem>>, %arg3: memref<1xf32, #tpu.memory_space<smem>>, %arg4: memref<8x128xf32, #tpu.memory_space<vmem>>) attributes {dimension_semantics = [#tpu.dimension_semantics<parallel>], iteration_bounds = array<i64: 4>, scalar_prefetch = 0 : i64, scratch_operands = 0 : i64, tpu.core_type = #tpu.core_type<tc>, window_params = [{transform_indices = @transform_0, window_bounds = array<i64: 8, 2048>}, {pipeline_mode = #tpu.pipeline_mode<synchronous>, transform_indices = @transform_1, window_bounds = array<i64: 2048, 128>}, {transform_indices = @transform_2, window_bounds = array<i64: 1>}, {transform_indices = @transform_3, window_bounds = array<i64: 8, 128>}]} {
    %c0 = arith.constant 0 : index
    %c0_0 = arith.constant 0 : index
    %0 = vector.load %arg1[%c0, %c0_0] : memref<8x2048xf32, #tpu.memory_space<vmem>>, vector<8x2048xf32>
    %c0_1 = arith.constant 0 : index
    %c0_2 = arith.constant 0 : index
    %1 = vector.load %arg2[%c0_1, %c0_2] : memref<2048x128xf32, #tpu.memory_space<vmem>>, vector<2048x128xf32>
    %cst = arith.constant dense<0.000000e+00> : vector<8x128xf32>
    %2 = tpu.matmul %0, %1, %cst {dimension_numbers = #tpu.dot_dimension_numbers<[1], [0], [0], [1], [0, 0, 1, 1], [], []>} : vector<8x2048xf32>, vector<2048x128xf32>, vector<8x128xf32> -> vector<8x128xf32>
    %c0_3 = arith.constant 0 : index
    %3 = memref.load %arg3[%c0_3] : memref<1xf32, #tpu.memory_space<smem>>
    %4 = vector.broadcast %3 : f32 to vector<8x128xf32>
    %5 = arith.addf %2, %4 : vector<8x128xf32>
    %c0_4 = arith.constant 0 : index
    %c0_5 = arith.constant 0 : index
    %6 = vector.load %arg4[%c0_4, %c0_5] : memref<8x128xf32, #tpu.memory_space<vmem>>, vector<8x128xf32>
    tpu.vector_store %arg4[%c0_4, %c0_5], %5 {strides = array<i32>} : memref<8x128xf32, #tpu.memory_space<vmem>>, vector<8x128xf32>,
    return
  }
  func.func @transform_0(%arg0: i32) -> (i32, i32) {
    %c0_i32 = arith.constant 0 : i32
    %c0_i32_0 = arith.constant 0 : i32
    return %arg0, %c0_i32 : i32, i32
  }
  func.func @transform_1(%arg0: i32) -> (i32, i32) {
    %c0_i32 = arith.constant 0 : i32
    %c0_i32_0 = arith.constant 0 : i32
    %c0_i32_1 = arith.constant 0 : i32
    return %c0_i32, %c0_i32_0 : i32, i32
  }
  func.func @transform_2(%arg0: i32) -> i32 {
    %c0_i32 = arith.constant 0 : i32
    %c0_i32_0 = arith.constant 0 : i32
    return %c0_i32 : i32
  }
  func.func @transform_3(%arg0: i32) -> (i32, i32) {
    %c0_i32 = arith.constant 0 : i32
    %c0_i32_0 = arith.constant 0 : i32
    return %arg0, %c0_i32 : i32, i32
  }
}

</mosaic_0001>

<llo_original>
// kernel: tpu_custom_call.1
$region0: #{tpu_custom_call.1}
  #allocation0 [shape = 'u32[]', space=smem, size = 0x4, offset = 0x4, fixed_abs, tag = 'smem constant byte address 0x4 - core index']
  #allocation1 [shape = 'u32[72,128]{1,0:T(1,128)}', space=vmem, size = 0x9000, scoped, tag = 'internal scratch']
  #allocation2 [shape = 'f32[1]{0:T(128)S(6)}', space=smem, size = 0x200, scoped, tag = 'scoped memory for tpu_custom_call.1']
  %s0 = inlined_call_operand.hbm [shape: f32[32,2048], index: 0, kind: input, shape index: {}]
  %s1 = inlined_call_operand.hbm [shape: f32[2048,128], index: 1, kind: input, shape index: {}]
  %s2 = inlined_call_operand.<no memory space> [shape: f32[1], index: 2, kind: input, shape index: {}]
  %s3 = inlined_call_operand.hbm [shape: f32[32,128], index: 3, kind: output, shape index: {}]
  %s4 = sld [smem:[#allocation0]]
  $region53: #{tpu_custom_call.1} parent=0
    _
  %s6 = ssub.s32 1, %s4
  %s7 = scalar_select 0, %s6, %s4
  %8 = sst [smem:[#allocation2]] %s2
  $region1: #{tpu_custom_call.1} parent=0
    #allocation3 [shape = 'u8[131072]{0}', space=vmem, size = 0x20000, scoped, tag = 'input window, operand 0']
    #allocation4 [shape = 's32[2]{0}', space=sflag, size = 0x8, scoped, tag = 'scoped memory for tpu_custom_call.1']
    #allocation5 [shape = 's32[2]{0}', space=sflag, size = 0x8, scoped, tag = 'scoped memory for tpu_custom_call.1']
    #allocation6 [shape = 'u8[1048576]{0}', space=vmem, size = 0x100000, scoped, tag = 'input window, operand 1, single buffered']
    #allocation7 [shape = 's32[1]{0}', space=sflag, size = 0x4, scoped, tag = 'scoped memory for tpu_custom_call.1']
    #allocation8 [shape = 'u8[8192]{0}', space=vmem, size = 0x2000, scoped, tag = 'output window, operand 0']
    %9 = vsyncpa [#allocation4], 0
    %s10 = scalar_lea.sflag [#allocation4], 1
    %11 = vsyncpa %s10, 0
    %12 = vsyncpa [#allocation7], 0
    %13 = vsyncpa [#allocation5], 0
    %s14 = scalar_lea.sflag [#allocation5], 1
    %15 = vsyncpa %s14, 0
    loop: start=0, step=1, limit=6
    $region2: #{tpu_custom_call.1} parent=1 // loop_pre_header
      _
    $region3: #{tpu_custom_call.1} parent=1 // loop_header
      %s17 = sphi 0, %s21
      %p18 = scmp.ge.s32.totalorder %s17, 6
      %s27 = sphi 0, %s29
      %s30 = sphi 0, %s27
      %s31 = sphi 0, %s30
      %s47 = sphi 0, %s31
      %s51 = sphi 0, %s51
      %s53 = sphi 0, %s51
      %s54 = sphi 0, %s53
      %s68 = sphi 0, %s54
      %s72 = sphi 0, %s72
      %s74 = sphi 0, %s72
      %s75 = sphi 0, %s74
      %s89 = sphi 0, %s75
      %s95 = sphi 0, %s97
      %s98 = sphi 0, %s95
      %s99 = sphi 0, %s98
      %s115 = sphi 0, %s99
    $region4: #{tpu_custom_call.1} parent=1 // loop_header_branch
      %20 = sbr.rel (%p18) target = $region8
    $region5: #{tpu_custom_call.1} parent=1 // loop_body
      %s22 = ssub.s32 %s17, 1
      %s23 = ssub.s32 %s17, 2
      %s24 = sadd.s32 %s17, 1
      %s25 = ssub.s32 %s17, %s24
      %p26 = scmp.eq.s32.totalorder %s25, 0
      %s28 = sadd.s32 %s27, 1
      %s29 = scalar_select %p26, %s27, %s28
      %p32 = pneg %p26
      %p33 = scmp.eq.s32.totalorder %s17, 3
      %p34 = por %p32, %p33
      %p35 = scmp.ne.s32.totalorder %s27, %s30
      %p36 = scmp.eq.s32.totalorder %s17, 0
      %p37 = por %p35, %p36
      %p38 = scmp.ne.s32.totalorder %s27, %s30
      %p39 = scmp.eq.s32.totalorder %s22, 3
      %p40 = por %p38, %p39
      %p41 = scmp.ne.s32.totalorder %s30, %s31
      %p42 = scmp.eq.s32.totalorder %s22, 0
      %p43 = por %p41, %p42
      %p44 = scmp.ne.s32.totalorder %s30, %s31
      %p45 = scmp.eq.s32.totalorder %s23, 3
      %p46 = por %p44, %p45
      %p48 = scmp.ne.s32.totalorder %s31, %s47
      %p49 = scmp.eq.s32.totalorder %s23, 0
      %p50 = por %p48, %p49
      %s52 = sadd.s32 %s51, 1
      %p55 = scmp.eq.s32.totalorder %s17, 3
      %p56 = scmp.ne.s32.totalorder %s51, %s53
      %p57 = scmp.eq.s32.totalorder %s17, 0
      %p58 = por %p56, %p57
      %p59 = scmp.ne.s32.totalorder %s51, %s53
      %p60 = scmp.eq.s32.totalorder %s22, 3
      %p61 = por %p59, %p60
      %p62 = scmp.ne.s32.totalorder %s53, %s54
      %p63 = scmp.eq.s32.totalorder %s22, 0
      %p64 = por %p62, %p63
      %p65 = scmp.ne.s32.totalorder %s53, %s54
      %p66 = scmp.eq.s32.totalorder %s23, 3
      %p67 = por %p65, %p66
      %p69 = scmp.ne.s32.totalorder %s54, %s68
      %p70 = scmp.eq.s32.totalorder %s23, 0
      %p71 = por %p69, %p70
      %s73 = sadd.s32 %s72, 1
      %p76 = scmp.eq.s32.totalorder %s17, 3
      %p77 = scmp.ne.s32.totalorder %s72, %s74
      %p78 = scmp.eq.s32.totalorder %s17, 0
      %p79 = por %p77, %p78
      %p80 = scmp.ne.s32.totalorder %s72, %s74
      %p81 = scmp.eq.s32.totalorder %s22, 3
      %p82 = por %p80, %p81
      %p83 = scmp.ne.s32.totalorder %s74, %s75
      %p84 = scmp.eq.s32.totalorder %s22, 0
      %p85 = por %p83, %p84
      %p86 = scmp.ne.s32.totalorder %s74, %s75
      %p87 = scmp.eq.s32.totalorder %s23, 3
      %p88 = por %p86, %p87
      %p90 = scmp.ne.s32.totalorder %s75, %s89
      %p91 = scmp.eq.s32.totalorder %s23, 0
      %p92 = por %p90, %p91
      %s93 = ssub.s32 %s17, %s24
      %p94 = scmp.eq.s32.totalorder %s93, 0
      %s96 = sadd.s32 %s95, 1
      %s97 = scalar_select %p94, %s95, %s96
      %p100 = pneg %p94
      %p101 = scmp.eq.s32.totalorder %s17, 3
      %p102 = por %p100, %p101
      %p103 = scmp.ne.s32.totalorder %s95, %s98
      %p104 = scmp.eq.s32.totalorder %s17, 0
      %p105 = por %p103, %p104
      %p106 = scmp.ne.s32.totalorder %s95, %s98
      %p107 = scmp.eq.s32.totalorder %s22, 3
      %p108 = por %p106, %p107
      %p109 = scmp.ne.s32.totalorder %s98, %s99
      %p110 = scmp.eq.s32.totalorder %s22, 0
      %p111 = por %p109, %p110
      %p112 = scmp.ne.s32.totalorder %s98, %s99
      %p113 = scmp.eq.s32.totalorder %s23, 3
      %p114 = por %p112, %p113
      %p116 = scmp.ne.s32.totalorder %s99, %s115
      %p117 = scmp.eq.s32.totalorder %s23, 0
      %p118 = por %p116, %p117
      %p119 = scmp.le.s32.totalorder 1, %s17
      %p120 = scmp.lt.s32.totalorder %s17, 5
      %p121 = pnand %p119, %p120
      %p122 = pneg %p121
      // Predicated region
      $region9: #{tpu_custom_call.1} parent=5 // pred_check
        _
      $region10: #{tpu_custom_call.1} parent=5 // pred_check_branch
        %124 = sbr.rel (%p121) target = $region12
      $region11: #{tpu_custom_call.1} parent=5 // pred_region
        %s125 = ssub.s32 %s17, 1
        // Predicated region
        $region13: #{tpu_custom_call.1} parent=11 // pred_check
          %p126 = pneg %p64
        $region14: #{tpu_custom_call.1} parent=11 // pred_check_branch
          %128 = sbr.rel (%p126) target = $region16
        $region15: #{tpu_custom_call.1} parent=11 // pred_region
          %130 = vsyncadd [#allocation7], 0
          %s131 = sshll.u32 %s1, 4
          %s132 = int_to_ptr.hbm [resolvable:$true] %s131
          %s133 = sshll.u32 [#allocation6], 4
          %s134 = int_to_ptr.vmem [resolvable:$true] %s133
          %139 = dma.hbm_to_vmem [thread:$0]  %s132, 32768, %s134, [#allocation7], 128, 128, 8
        $region16: #{tpu_custom_call.1} parent=11 // pred_fallthru
          _
        // Predicated region
        $region17: #{tpu_custom_call.1} parent=11 // pred_check
          %p140 = pneg %p85
        $region18: #{tpu_custom_call.1} parent=11 // pred_check_branch
          %142 = sbr.rel (%p140) target = $region20
        $region19: #{tpu_custom_call.1} parent=11 // pred_region
          _
        $region20: #{tpu_custom_call.1} parent=11 // pred_fallthru
          _
      $region12: #{tpu_custom_call.1} parent=5 // pred_fallthru
        _
      %p143 = scmp.lt.s32.totalorder %s17, 4
      // Predicated region
      $region21: #{tpu_custom_call.1} parent=5 // pred_check
        %p144 = pneg %p143
      $region22: #{tpu_custom_call.1} parent=5 // pred_check_branch
        %146 = sbr.rel (%p144) target = $region24
      $region23: #{tpu_custom_call.1} parent=5 // pred_region
        // Predicated region
        $region25: #{tpu_custom_call.1} parent=23 // pred_check
          %p147 = pneg %p37
        $region26: #{tpu_custom_call.1} parent=23 // pred_check_branch
          %149 = sbr.rel (%p147) target = $region28
        $region27: #{tpu_custom_call.1} parent=23 // pred_region
          %s150 = sand.u32 %s27, 1
          %s151 = scalar_lea.sflag [#allocation4], %s150
          %s152 = sand.u32 %s27, 1
          %s153 = smul.addr %s152, 128
          %s154 = scalar_lea.vmem [#allocation3], %s153
          %156 = vsyncadd %s151, 0
          %s157 = smul.addr %s17, 16
          %s158 = smul.addr %s157, 8
          %s159 = scalar_lea.hbm %s0, %s158
          %s161 = sshll.u32 %s159, 4
          %s162 = int_to_ptr.hbm [resolvable:$true] %s161
          %s163 = sshll.u32 %s154, 4
          %s164 = int_to_ptr.vmem [resolvable:$true] %s163
          %166 = dma.hbm_to_vmem [thread:$0]  %s162, 2048, %s164, %s151
        $region28: #{tpu_custom_call.1} parent=23 // pred_fallthru
          _
      $region24: #{tpu_custom_call.1} parent=5 // pred_fallthru
        _
      %p167 = scmp.le.s32.totalorder 1, %s17
      %p168 = scmp.lt.s32.totalorder %s17, 5
      %p169 = pnand %p167, %p168
      %p170 = pneg %p169
      // Predicated region
      $region29: #{tpu_custom_call.1} parent=5 // pred_check
        _
      $region30: #{tpu_custom_call.1} parent=5 // pred_check_branch
        %172 = sbr.rel (%p169) target = $region32
      $region31: #{tpu_custom_call.1} parent=5 // pred_region
        %s173 = ssub.s32 %s17, 1
        %s174 = sand.u32 %s30, 1
        %s175 = scalar_lea.sflag [#allocation4], %s174
        %s176 = sand.u32 %s30, 1
        %s177 = smul.addr %s176, 128
        %s178 = scalar_lea.vmem [#allocation3], %s177
        // Predicated region
        $region33: #{tpu_custom_call.1} parent=31 // pred_check
          %p179 = pneg %p43
        $region34: #{tpu_custom_call.1} parent=31 // pred_check_branch
          %181 = sbr.rel (%p179) target = $region36
        $region35: #{tpu_custom_call.1} parent=31 // pred_region
          %183 = dma.done %s175, 2048
        $region36: #{tpu_custom_call.1} parent=31 // pred_fallthru
          _
        // Predicated region
        $region37: #{tpu_custom_call.1} parent=31 // pred_check
          %p184 = pneg %p64
        $region38: #{tpu_custom_call.1} parent=31 // pred_check_branch
          %186 = sbr.rel (%p184) target = $region40
        $region39: #{tpu_custom_call.1} parent=31 // pred_region
          %188 = dma.done [#allocation7], 32768
        $region40: #{tpu_custom_call.1} parent=31 // pred_fallthru
          _
        %s189 = sand.u32 %s30, 1
        %s190 = scalar_lea.sflag [#allocation4], %s189
        %s191 = sand.u32 %s30, 1
        %s192 = smul.addr %s191, 128
        %s193 = scalar_lea.vmem [#allocation3], %s192
        %p194 = pneg %p43
        %p195 = pneg %p40
        %p196 = pneg %p64
        %p197 = pneg %p61
        %p198 = pneg %p85
        %p199 = pneg %p82
        %p200 = pneg %p111
        %p201 = pneg %p108
        %s202 = sand.u32 %s98, 1
        %s203 = scalar_lea.sflag [#allocation5], %s202
        %s204 = sand.u32 %s98, 1
        %s205 = smul.addr %s204, 8
        %s206 = scalar_lea.vmem [#allocation8], %s205
        %v207 = vld [vmem:[%s178] sm:$0xff]
        %v208 = vld [vmem:[%s178 + $0x8] sm:$0xff]
        %v209 = vld [vmem:[%s178 + $0x10] sm:$0xff]
        %v210 = vld [vmem:[%s178 + $0x18] sm:$0xff]
        %v211 = vld [vmem:[%s178 + $0x20] sm:$0xff]
        %v212 = vld [vmem:[%s178 + $0x28] sm:$0xff]
        %v213 = vld [vmem:[%s178 + $0x30] sm:$0xff]
        %v214 = vld [vmem:[%s178 + $0x38] sm:$0xff]
        %v215 = vld [vmem:[%s178 + $0x40] sm:$0xff]
        %v216 = vld [vmem:[%s178 + $0x48] sm:$0xff]
        %v217 = vld [vmem:[%s178 + $0x50] sm:$0xff]
        %v218 = vld [vmem:[%s178 + $0x58] sm:$0xff]
        %v219 = vld [vmem:[%s178 + $0x60] sm:$0xff]
        %v220 = vld [vmem:[%s178 + $0x68] sm:$0xff]
        %v221 = vld [vmem:[%s178 + $0x70] sm:$0xff]
        %v222 = vld [vmem:[%s178 + $0x78] sm:$0xff]
        %v223 = vld [vmem:[#allocation6] sm:$0xff]
        %v224 = vld [vmem:[#allocation6 + $0x8] sm:$0xff]
        %v225 = vld [vmem:[#allocation6 + $0x10] sm:$0xff]
        %v226 = vld [vmem:[#allocation6 + $0x18] sm:$0xff]
        %v227 = vld [vmem:[#allocation6 + $0x20] sm:$0xff]
        %v228 = vld [vmem:[#allocation6 + $0x28] sm:$0xff]
        %v229 = vld [vmem:[#allocation6 + $0x30] sm:$0xff]
        %v230 = vld [vmem:[#allocation6 + $0x38] sm:$0xff]
        %v231 = vld [vmem:[#allocation6 + $0x40] sm:$0xff]
        %v232 = vld [vmem:[#allocation6 + $0x48] sm:$0xff]
        %v233 = vld [vmem:[#allocation6 + $0x50] sm:$0xff]
        %v234 = vld [vmem:[#allocation6 + $0x58] sm:$0xff]
        %v235 = vld [vmem:[#allocation6 + $0x60] sm:$0xff]
        %v236 = vld [vmem:[#allocation6 + $0x68] sm:$0xff]
        %v237 = vld [vmem:[#allocation6 + $0x70] sm:$0xff]
        %v238 = vld [vmem:[#allocation6 + $0x78] sm:$0xff]
        %v239 = vld [vmem:[#allocation6 + $0x80] sm:$0xff]
        %v240 = vld [vmem:[#allocation6 + $0x88] sm:$0xff]
        %v241 = vld [vmem:[#allocation6 + $0x90] sm:$0xff]
        %v242 = vld [vmem:[#allocation6 + $0x98] sm:$0xff]
        %v243 = vld [vmem:[#allocation6 + $0xa0] sm:$0xff]
        %v244 = vld [vmem:[#allocation6 + $0xa8] sm:$0xff]
        %v245 = vld [vmem:[#allocation6 + $0xb0] sm:$0xff]
        %v246 = vld [vmem:[#allocation6 + $0xb8] sm:$0xff]
        %v247 = vld [vmem:[#allocation6 + $0xc0] sm:$0xff]
        %v248 = vld [vmem:[#allocation6 + $0xc8] sm:$0xff]
        %v249 = vld [vmem:[#allocation6 + $0xd0] sm:$0xff]
        %v250 = vld [vmem:[#allocation6 + $0xd8] sm:$0xff]
        %v251 = vld [vmem:[#allocation6 + $0xe0] sm:$0xff]
        %v252 = vld [vmem:[#allocation6 + $0xe8] sm:$0xff]
        %v253 = vld [vmem:[#allocation6 + $0xf0] sm:$0xff]
        %v254 = vld [vmem:[#allocation6 + $0xf8] sm:$0xff]
        %v255 = vld [vmem:[#allocation6 + $0x100] sm:$0xff]
        %v256 = vld [vmem:[#allocation6 + $0x108] sm:$0xff]
        %v257 = vld [vmem:[#allocation6 + $0x110] sm:$0xff]
        %v258 = vld [vmem:[#allocation6 + $0x118] sm:$0xff]
        %v259 = vld [vmem:[#allocation6 + $0x120] sm:$0xff]
        %v260 = vld [vmem:[#allocation6 + $0x128] sm:$0xff]
        %v261 = vld [vmem:[#allocation6 + $0x130] sm:$0xff]
        %v262 = vld [vmem:[#allocation6 + $0x138] sm:$0xff]
        %v263 = vld [vmem:[#allocation6 + $0x140] sm:$0xff]
        %v264 = vld [vmem:[#allocation6 + $0x148] sm:$0xff]
        %v265 = vld [vmem:[#allocation6 + $0x150] sm:$0xff]
        %v266 = vld [vmem:[#allocation6 + $0x158] sm:$0xff]
        %v267 = vld [vmem:[#allocation6 + $0x160] sm:$0xff]
        %v268 = vld [vmem:[#allocation6 + $0x168] sm:$0xff]
        %v269 = vld [vmem:[#allocation6 + $0x170] sm:$0xff]
        %v270 = vld [vmem:[#allocation6 + $0x178] sm:$0xff]
        %v271 = vld [vmem:[#allocation6 + $0x180] sm:$0xff]
        %v272 = vld [vmem:[#allocation6 + $0x188] sm:$0xff]
        %v273 = vld [vmem:[#allocation6 + $0x190] sm:$0xff]
        %v274 = vld [vmem:[#allocation6 + $0x198] sm:$0xff]
        %v275 = vld [vmem:[#allocation6 + $0x1a0] sm:$0xff]
        %v276 = vld [vmem:[#allocation6 + $0x1a8] sm:$0xff]
        %v277 = vld [vmem:[#allocation6 + $0x1b0] sm:$0xff]
        %v278 = vld [vmem:[#allocation6 + $0x1b8] sm:$0xff]
        %v279 = vld [vmem:[#allocation6 + $0x1c0] sm:$0xff]
        %v280 = vld [vmem:[#allocation6 + $0x1c8] sm:$0xff]
        %v281 = vld [vmem:[#allocation6 + $0x1d0] sm:$0xff]
        %v282 = vld [vmem:[#allocation6 + $0x1d8] sm:$0xff]
        %v283 = vld [vmem:[#allocation6 + $0x1e0] sm:$0xff]
        %v284 = vld [vmem:[#allocation6 + $0x1e8] sm:$0xff]
        %v285 = vld [vmem:[#allocation6 + $0x1f0] sm:$0xff]
        %v286 = vld [vmem:[#allocation6 + $0x1f8] sm:$0xff]
        %v287 = vld [vmem:[#allocation6 + $0x200] sm:$0xff]
        %v288 = vld [vmem:[#allocation6 + $0x208] sm:$0xff]
        %v289 = vld [vmem:[#allocation6 + $0x210] sm:$0xff]
        %v290 = vld [vmem:[#allocation6 + $0x218] sm:$0xff]
        %v291 = vld [vmem:[#allocation6 + $0x220] sm:$0xff]
        %v292 = vld [vmem:[#allocation6 + $0x228] sm:$0xff]
        %v293 = vld [vmem:[#allocation6 + $0x230] sm:$0xff]
        %v294 = vld [vmem:[#allocation6 + $0x238] sm:$0xff]
        %v295 = vld [vmem:[#allocation6 + $0x240] sm:$0xff]
        %v296 = vld [vmem:[#allocation6 + $0x248] sm:$0xff]
        %v297 = vld [vmem:[#allocation6 + $0x250] sm:$0xff]
        %v298 = vld [vmem:[#allocation6 + $0x258] sm:$0xff]
        %v299 = vld [vmem:[#allocation6 + $0x260] sm:$0xff]
        %v300 = vld [vmem:[#allocation6 + $0x268] sm:$0xff]
        %v301 = vld [vmem:[#allocation6 + $0x270] sm:$0xff]
        %v302 = vld [vmem:[#allocation6 + $0x278] sm:$0xff]
        %v303 = vld [vmem:[#allocation6 + $0x280] sm:$0xff]
        %v304 = vld [vmem:[#allocation6 + $0x288] sm:$0xff]
        %v305 = vld [vmem:[#allocation6 + $0x290] sm:$0xff]
        %v306 = vld [vmem:[#allocation6 + $0x298] sm:$0xff]
        %v307 = vld [vmem:[#allocation6 + $0x2a0] sm:$0xff]
        %v308 = vld [vmem:[#allocation6 + $0x2a8] sm:$0xff]
        %v309 = vld [vmem:[#allocation6 + $0x2b0] sm:$0xff]
        %v310 = vld [vmem:[#allocation6 + $0x2b8] sm:$0xff]
        %v311 = vld [vmem:[#allocation6 + $0x2c0] sm:$0xff]
        %v312 = vld [vmem:[#allocation6 + $0x2c8] sm:$0xff]
        %v313 = vld [vmem:[#allocation6 + $0x2d0] sm:$0xff]
        %v314 = vld [vmem:[#allocation6 + $0x2d8] sm:$0xff]
        %v315 = vld [vmem:[#allocation6 + $0x2e0] sm:$0xff]
        %v316 = vld [vmem:[#allocation6 + $0x2e8] sm:$0xff]
        %v317 = vld [vmem:[#allocation6 + $0x2f0] sm:$0xff]
        %v318 = vld [vmem:[#allocation6 + $0x2f8] sm:$0xff]
        %v319 = vld [vmem:[#allocation6 + $0x300] sm:$0xff]
        %v320 = vld [vmem:[#allocation6 + $0x308] sm:$0xff]
        %v321 = vld [vmem:[#allocation6 + $0x310] sm:$0xff]
        %v322 = vld [vmem:[#allocation6 + $0x318] sm:$0xff]
        %v323 = vld [vmem:[#allocation6 + $0x320] sm:$0xff]
        %v324 = vld [vmem:[#allocation6 + $0x328] sm:$0xff]
        %v325 = vld [vmem:[#allocation6 + $0x330] sm:$0xff]
        %v326 = vld [vmem:[#allocation6 + $0x338] sm:$0xff]
        %v327 = vld [vmem:[#allocation6 + $0x340] sm:$0xff]
        %v328 = vld [vmem:[#allocation6 + $0x348] sm:$0xff]
        %v329 = vld [vmem:[#allocation6 + $0x350] sm:$0xff]
        %v330 = vld [vmem:[#allocation6 + $0x358] sm:$0xff]
        %v331 = vld [vmem:[#allocation6 + $0x360] sm:$0xff]
        %v332 = vld [vmem:[#allocation6 + $0x368] sm:$0xff]
        %v333 = vld [vmem:[#allocation6 + $0x370] sm:$0xff]
        %v334 = vld [vmem:[#allocation6 + $0x378] sm:$0xff]
        %v335 = vld [vmem:[#allocation6 + $0x380] sm:$0xff]
        %v336 = vld [vmem:[#allocation6 + $0x388] sm:$0xff]
        %v337 = vld [vmem:[#allocation6 + $0x390] sm:$0xff]
        %v338 = vld [vmem:[#allocation6 + $0x398] sm:$0xff]
        %v339 = vld [vmem:[#allocation6 + $0x3a0] sm:$0xff]
        %v340 = vld [vmem:[#allocation6 + $0x3a8] sm:$0xff]
        %v341 = vld [vmem:[#allocation6 + $0x3b0] sm:$0xff]
        %v342 = vld [vmem:[#allocation6 + $0x3b8] sm:$0xff]
        %v343 = vld [vmem:[#allocation6 + $0x3c0] sm:$0xff]
        %v344 = vld [vmem:[#allocation6 + $0x3c8] sm:$0xff]
        %v345 = vld [vmem:[#allocation6 + $0x3d0] sm:$0xff]
        %v346 = vld [vmem:[#allocation6 + $0x3d8] sm:$0xff]
        %v347 = vld [vmem:[#allocation6 + $0x3e0] sm:$0xff]
        %v348 = vld [vmem:[#allocation6 + $0x3e8] sm:$0xff]
        %v349 = vld [vmem:[#allocation6 + $0x3f0] sm:$0xff]
        %v350 = vld [vmem:[#allocation6 + $0x3f8] sm:$0xff]
        %v351 = vld [vmem:[#allocation6 + $0x400] sm:$0xff]
        %v352 = vld [vmem:[#allocation6 + $0x408] sm:$0xff]
        %v353 = vld [vmem:[#allocation6 + $0x410] sm:$0xff]
        %v354 = vld [vmem:[#allocation6 + $0x418] sm:$0xff]
        %v355 = vld [vmem:[#allocation6 + $0x420] sm:$0xff]
        %v356 = vld [vmem:[#allocation6 + $0x428] sm:$0xff]
        %v357 = vld [vmem:[#allocation6 + $0x430] sm:$0xff]
        %v358 = vld [vmem:[#allocation6 + $0x438] sm:$0xff]
        %v359 = vld [vmem:[#allocation6 + $0x440] sm:$0xff]
        %v360 = vld [vmem:[#allocation6 + $0x448] sm:$0xff]
        %v361 = vld [vmem:[#allocation6 + $0x450] sm:$0xff]
        %v362 = vld [vmem:[#allocation6 + $0x458] sm:$0xff]
        %v363 = vld [vmem:[#allocation6 + $0x460] sm:$0xff]
        %v364 = vld [vmem:[#allocation6 + $0x468] sm:$0xff]
        %v365 = vld [vmem:[#allocation6 + $0x470] sm:$0xff]
        %v366 = vld [vmem:[#allocation6 + $0x478] sm:$0xff]
        %v367 = vld [vmem:[#allocation6 + $0x480] sm:$0xff]
        %v368 = vld [vmem:[#allocation6 + $0x488] sm:$0xff]
        %v369 = vld [vmem:[#allocation6 + $0x490] sm:$0xff]
        %v370 = vld [vmem:[#allocation6 + $0x498] sm:$0xff]
        %v371 = vld [vmem:[#allocation6 + $0x4a0] sm:$0xff]
        %v372 = vld [vmem:[#allocation6 + $0x4a8] sm:$0xff]
        %v373 = vld [vmem:[#allocation6 + $0x4b0] sm:$0xff]
        %v374 = vld [vmem:[#allocation6 + $0x4b8] sm:$0xff]
        %v375 = vld [vmem:[#allocation6 + $0x4c0] sm:$0xff]
        %v376 = vld [vmem:[#allocation6 + $0x4c8] sm:$0xff]
        %v377 = vld [vmem:[#allocation6 + $0x4d0] sm:$0xff]
        %v378 = vld [vmem:[#allocation6 + $0x4d8] sm:$0xff]
        %v379 = vld [vmem:[#allocation6 + $0x4e0] sm:$0xff]
        %v380 = vld [vmem:[#allocation6 + $0x4e8] sm:$0xff]
        %v381 = vld [vmem:[#allocation6 + $0x4f0] sm:$0xff]
        %v382 = vld [vmem:[#allocation6 + $0x4f8] sm:$0xff]
        %v383 = vld [vmem:[#allocation6 + $0x500] sm:$0xff]
        %v384 = vld [vmem:[#allocation6 + $0x508] sm:$0xff]
        %v385 = vld [vmem:[#allocation6 + $0x510] sm:$0xff]
        %v386 = vld [vmem:[#allocation6 + $0x518] sm:$0xff]
        %v387 = vld [vmem:[#allocation6 + $0x520] sm:$0xff]
        %v388 = vld [vmem:[#allocation6 + $0x528] sm:$0xff]
        %v389 = vld [vmem:[#allocation6 + $0x530] sm:$0xff]
        %v390 = vld [vmem:[#allocation6 + $0x538] sm:$0xff]
        %v391 = vld [vmem:[#allocation6 + $0x540] sm:$0xff]
        %v392 = vld [vmem:[#allocation6 + $0x548] sm:$0xff]
        %v393 = vld [vmem:[#allocation6 + $0x550] sm:$0xff]
        %v394 = vld [vmem:[#allocation6 + $0x558] sm:$0xff]
        %v395 = vld [vmem:[#allocation6 + $0x560] sm:$0xff]
        %v396 = vld [vmem:[#allocation6 + $0x568] sm:$0xff]
        %v397 = vld [vmem:[#allocation6 + $0x570] sm:$0xff]
        %v398 = vld [vmem:[#allocation6 + $0x578] sm:$0xff]
        %v399 = vld [vmem:[#allocation6 + $0x580] sm:$0xff]
        %v400 = vld [vmem:[#allocation6 + $0x588] sm:$0xff]
        %v401 = vld [vmem:[#allocation6 + $0x590] sm:$0xff]
        %v402 = vld [vmem:[#allocation6 + $0x598] sm:$0xff]
        %v403 = vld [vmem:[#allocation6 + $0x5a0] sm:$0xff]
        %v404 = vld [vmem:[#allocation6 + $0x5a8] sm:$0xff]
        %v405 = vld [vmem:[#allocation6 + $0x5b0] sm:$0xff]
        %v406 = vld [vmem:[#allocation6 + $0x5b8] sm:$0xff]
        %v407 = vld [vmem:[#allocation6 + $0x5c0] sm:$0xff]
        %v408 = vld [vmem:[#allocation6 + $0x5c8] sm:$0xff]
        %v409 = vld [vmem:[#allocation6 + $0x5d0] sm:$0xff]
        %v410 = vld [vmem:[#allocation6 + $0x5d8] sm:$0xff]
        %v411 = vld [vmem:[#allocation6 + $0x5e0] sm:$0xff]
        %v412 = vld [vmem:[#allocation6 + $0x5e8] sm:$0xff]
        %v413 = vld [vmem:[#allocation6 + $0x5f0] sm:$0xff]
        %v414 = vld [vmem:[#allocation6 + $0x5f8] sm:$0xff]
        %v415 = vld [vmem:[#allocation6 + $0x600] sm:$0xff]
        %v416 = vld [vmem:[#allocation6 + $0x608] sm:$0xff]
        %v417 = vld [vmem:[#allocation6 + $0x610] sm:$0xff]
        %v418 = vld [vmem:[#allocation6 + $0x618] sm:$0xff]
        %v419 = vld [vmem:[#allocation6 + $0x620] sm:$0xff]
        %v420 = vld [vmem:[#allocation6 + $0x628] sm:$0xff]
        %v421 = vld [vmem:[#allocation6 + $0x630] sm:$0xff]
        %v422 = vld [vmem:[#allocation6 + $0x638] sm:$0xff]
        %v423 = vld [vmem:[#allocation6 + $0x640] sm:$0xff]
        %v424 = vld [vmem:[#allocation6 + $0x648] sm:$0xff]
        %v425 = vld [vmem:[#allocation6 + $0x650] sm:$0xff]
        %v426 = vld [vmem:[#allocation6 + $0x658] sm:$0xff]
        %v427 = vld [vmem:[#allocation6 + $0x660] sm:$0xff]
        %v428 = vld [vmem:[#allocation6 + $0x668] sm:$0xff]
        %v429 = vld [vmem:[#allocation6 + $0x670] sm:$0xff]
        %v430 = vld [vmem:[#allocation6 + $0x678] sm:$0xff]
        %v431 = vld [vmem:[#allocation6 + $0x680] sm:$0xff]
        %v432 = vld [vmem:[#allocation6 + $0x688] sm:$0xff]
        %v433 = vld [vmem:[#allocation6 + $0x690] sm:$0xff]
        %v434 = vld [vmem:[#allocation6 + $0x698] sm:$0xff]
        %v435 = vld [vmem:[#allocation6 + $0x6a0] sm:$0xff]
        %v436 = vld [vmem:[#allocation6 + $0x6a8] sm:$0xff]
        %v437 = vld [vmem:[#allocation6 + $0x6b0] sm:$0xff]
        %v438 = vld [vmem:[#allocation6 + $0x6b8] sm:$0xff]
        %v439 = vld [vmem:[#allocation6 + $0x6c0] sm:$0xff]
        %v440 = vld [vmem:[#allocation6 + $0x6c8] sm:$0xff]
        %v441 = vld [vmem:[#allocation6 + $0x6d0] sm:$0xff]
        %v442 = vld [vmem:[#allocation6 + $0x6d8] sm:$0xff]
        %v443 = vld [vmem:[#allocation6 + $0x6e0] sm:$0xff]
        %v444 = vld [vmem:[#allocation6 + $0x6e8] sm:$0xff]
        %v445 = vld [vmem:[#allocation6 + $0x6f0] sm:$0xff]
        %v446 = vld [vmem:[#allocation6 + $0x6f8] sm:$0xff]
        %v447 = vld [vmem:[#allocation6 + $0x700] sm:$0xff]
        %v448 = vld [vmem:[#allocation6 + $0x708] sm:$0xff]
        %v449 = vld [vmem:[#allocation6 + $0x710] sm:$0xff]
        %v450 = vld [vmem:[#allocation6 + $0x718] sm:$0xff]
        %v451 = vld [vmem:[#allocation6 + $0x720] sm:$0xff]
        %v452 = vld [vmem:[#allocation6 + $0x728] sm:$0xff]
        %v453 = vld [vmem:[#allocation6 + $0x730] sm:$0xff]
        %v454 = vld [vmem:[#allocation6 + $0x738] sm:$0xff]
        %v455 = vld [vmem:[#allocation6 + $0x740] sm:$0xff]
        %v456 = vld [vmem:[#allocation6 + $0x748] sm:$0xff]
        %v457 = vld [vmem:[#allocation6 + $0x750] sm:$0xff]
        %v458 = vld [vmem:[#allocation6 + $0x758] sm:$0xff]
        %v459 = vld [vmem:[#allocation6 + $0x760] sm:$0xff]
        %v460 = vld [vmem:[#allocation6 + $0x768] sm:$0xff]
        %v461 = vld [vmem:[#allocation6 + $0x770] sm:$0xff]
        %v462 = vld [vmem:[#allocation6 + $0x778] sm:$0xff]
        %v463 = vld [vmem:[#allocation6 + $0x780] sm:$0xff]
        %v464 = vld [vmem:[#allocation6 + $0x788] sm:$0xff]
        %v465 = vld [vmem:[#allocation6 + $0x790] sm:$0xff]
        %v466 = vld [vmem:[#allocation6 + $0x798] sm:$0xff]
        %v467 = vld [vmem:[#allocation6 + $0x7a0] sm:$0xff]
        %v468 = vld [vmem:[#allocation6 + $0x7a8] sm:$0xff]
        %v469 = vld [vmem:[#allocation6 + $0x7b0] sm:$0xff]
        %v470 = vld [vmem:[#allocation6 + $0x7b8] sm:$0xff]
        %v471 = vld [vmem:[#allocation6 + $0x7c0] sm:$0xff]
        %v472 = vld [vmem:[#allocation6 + $0x7c8] sm:$0xff]
        %v473 = vld [vmem:[#allocation6 + $0x7d0] sm:$0xff]
        %v474 = vld [vmem:[#allocation6 + $0x7d8] sm:$0xff]
        %v475 = vld [vmem:[#allocation6 + $0x7e0] sm:$0xff]
        %v476 = vld [vmem:[#allocation6 + $0x7e8] sm:$0xff]
        %v477 = vld [vmem:[#allocation6 + $0x7f0] sm:$0xff]
        %v478 = vld [vmem:[#allocation6 + $0x7f8] sm:$0xff]
        %s479 = sld [smem:[#allocation2]]
        %v480 = vstv %s479
        %481 = vmatpush.msra.mxu0 %v238
        %482 = vmatpush.msra.mxu0 %v237
        %483 = vmatpush.msra.mxu0 %v236
        %484 = vmatpush.msra.mxu0 %v235
        %485 = vmatpush.msra.mxu0 %v234
        %486 = vmatpush.msra.mxu0 %v233
        %487 = vmatpush.msra.mxu0 %v232
        %488 = vmatpush.msra.mxu0 %v231
        %489 = vmatpush.msra.mxu0 %v230
        %490 = vmatpush.msra.mxu0 %v229
        %491 = vmatpush.msra.mxu0 %v228
        %492 = vmatpush.msra.mxu0 %v227
        %493 = vmatpush.msra.mxu0 %v226
        %494 = vmatpush.msra.mxu0 %v225
        %495 = vmatpush.msra.mxu0 %v224
        %496 = vmatpush.msra.mxu0 %v223
        %497 = vmatmul.f32.gmra.mxu0 %v207
        %v498 = vpop.f32.mrf.mxu0
        %v499 = vadd.f32 %v480, %v498
        %500 = vdwg.mxu0
        %501 = vmatpush.msra.mxu0 %v254
        %502 = vmatpush.msra.mxu0 %v253
        %503 = vmatpush.msra.mxu0 %v252
        %504 = vmatpush.msra.mxu0 %v251
        %505 = vmatpush.msra.mxu0 %v250
        %506 = vmatpush.msra.mxu0 %v249
        %507 = vmatpush.msra.mxu0 %v248
        %508 = vmatpush.msra.mxu0 %v247
        %509 = vmatpush.msra.mxu0 %v246
        %510 = vmatpush.msra.mxu0 %v245
        %511 = vmatpush.msra.mxu0 %v244
        %512 = vmatpush.msra.mxu0 %v243
        %513 = vmatpush.msra.mxu0 %v242
        %514 = vmatpush.msra.mxu0 %v241
        %515 = vmatpush.msra.mxu0 %v240
        %516 = vmatpush.msra.mxu0 %v239
        %517 = vmatmul.f32.gmra.mxu0 %v208
        %v518 = vpop.f32.mrf.mxu0
        %v519 = vadd.f32 %v499, %v518
        %520 = vdwg.mxu0
        %521 = vmatpush.msra.mxu0 %v270
        %522 = vmatpush.msra.mxu0 %v269
        %523 = vmatpush.msra.mxu0 %v268
        %524 = vmatpush.msra.mxu0 %v267
        %525 = vmatpush.msra.mxu0 %v266
        %526 = vmatpush.msra.mxu0 %v265
        %527 = vmatpush.msra.mxu0 %v264
        %528 = vmatpush.msra.mxu0 %v263
        %529 = vmatpush.msra.mxu0 %v262
        %530 = vmatpush.msra.mxu0 %v261
        %531 = vmatpush.msra.mxu0 %v260
        %532 = vmatpush.msra.mxu0 %v259
        %533 = vmatpush.msra.mxu0 %v258
        %534 = vmatpush.msra.mxu0 %v257
        %535 = vmatpush.msra.mxu0 %v256
        %536 = vmatpush.msra.mxu0 %v255
        %537 = vmatmul.f32.gmra.mxu0 %v209
        %v538 = vpop.f32.mrf.mxu0
        %v539 = vadd.f32 %v519, %v538
        %540 = vdwg.mxu0
        %541 = vmatpush.msra.mxu0 %v286
        %542 = vmatpush.msra.mxu0 %v285
        %543 = vmatpush.msra.mxu0 %v284
        %544 = vmatpush.msra.mxu0 %v283
        %545 = vmatpush.msra.mxu0 %v282
        %546 = vmatpush.msra.mxu0 %v281
        %547 = vmatpush.msra.mxu0 %v280
        %548 = vmatpush.msra.mxu0 %v279
        %549 = vmatpush.msra.mxu0 %v278
        %550 = vmatpush.msra.mxu0 %v277
        %551 = vmatpush.msra.mxu0 %v276
        %552 = vmatpush.msra.mxu0 %v275
        %553 = vmatpush.msra.mxu0 %v274
        %554 = vmatpush.msra.mxu0 %v273
        %555 = vmatpush.msra.mxu0 %v272
        %556 = vmatpush.msra.mxu0 %v271
        %557 = vmatmul.f32.gmra.mxu0 %v210
        %v558 = vpop.f32.mrf.mxu0
        %v559 = vadd.f32 %v539, %v558
        %560 = vdwg.mxu0
        %561 = vmatpush.msra.mxu0 %v302
        %562 = vmatpush.msra.mxu0 %v301
        %563 = vmatpush.msra.mxu0 %v300
        %564 = vmatpush.msra.mxu0 %v299
        %565 = vmatpush.msra.mxu0 %v298
        %566 = vmatpush.msra.mxu0 %v297
        %567 = vmatpush.msra.mxu0 %v296
        %568 = vmatpush.msra.mxu0 %v295
        %569 = vmatpush.msra.mxu0 %v294
        %570 = vmatpush.msra.mxu0 %v293
        %571 = vmatpush.msra.mxu0 %v292
        %572 = vmatpush.msra.mxu0 %v291
        %573 = vmatpush.msra.mxu0 %v290
        %574 = vmatpush.msra.mxu0 %v289
        %575 = vmatpush.msra.mxu0 %v288
        %576 = vmatpush.msra.mxu0 %v287
        %577 = vmatmul.f32.gmra.mxu0 %v211
        %v578 = vpop.f32.mrf.mxu0
        %v579 = vadd.f32 %v559, %v578
        %580 = vdwg.mxu0
        %581 = vmatpush.msra.mxu0 %v318
        %582 = vmatpush.msra.mxu0 %v317
        %583 = vmatpush.msra.mxu0 %v316
        %584 = vmatpush.msra.mxu0 %v315
        %585 = vmatpush.msra.mxu0 %v314
        %586 = vmatpush.msra.mxu0 %v313
        %587 = vmatpush.msra.mxu0 %v312
        %588 = vmatpush.msra.mxu0 %v311
        %589 = vmatpush.msra.mxu0 %v310
        %590 = vmatpush.msra.mxu0 %v309
        %591 = vmatpush.msra.mxu0 %v308
        %592 = vmatpush.msra.mxu0 %v307
        %593 = vmatpush.msra.mxu0 %v306
        %594 = vmatpush.msra.mxu0 %v305
        %595 = vmatpush.msra.mxu0 %v304
        %596 = vmatpush.msra.mxu0 %v303
        %597 = vmatmul.f32.gmra.mxu0 %v212
        %v598 = vpop.f32.mrf.mxu0
        %v599 = vadd.f32 %v579, %v598
        %600 = vdwg.mxu0
        %601 = vmatpush.msra.mxu0 %v334
        %602 = vmatpush.msra.mxu0 %v333
        %603 = vmatpush.msra.mxu0 %v332
        %604 = vmatpush.msra.mxu0 %v331
        %605 = vmatpush.msra.mxu0 %v330
        %606 = vmatpush.msra.mxu0 %v329
        %607 = vmatpush.msra.mxu0 %v328
        %608 = vmatpush.msra.mxu0 %v327
        %609 = vmatpush.msra.mxu0 %v326
        %610 = vmatpush.msra.mxu0 %v325
        %611 = vmatpush.msra.mxu0 %v324
        %612 = vmatpush.msra.mxu0 %v323
        %613 = vmatpush.msra.mxu0 %v322
        %614 = vmatpush.msra.mxu0 %v321
        %615 = vmatpush.msra.mxu0 %v320
        %616 = vmatpush.msra.mxu0 %v319
        %617 = vmatmul.f32.gmra.mxu0 %v213
        %v618 = vpop.f32.mrf.mxu0
        %v619 = vadd.f32 %v599, %v618
        %620 = vdwg.mxu0
        %621 = vmatpush.msra.mxu0 %v350
        %622 = vmatpush.msra.mxu0 %v349
        %623 = vmatpush.msra.mxu0 %v348
        %624 = vmatpush.msra.mxu0 %v347
        %625 = vmatpush.msra.mxu0 %v346
        %626 = vmatpush.msra.mxu0 %v345
        %627 = vmatpush.msra.mxu0 %v344
        %628 = vmatpush.msra.mxu0 %v343
        %629 = vmatpush.msra.mxu0 %v342
        %630 = vmatpush.msra.mxu0 %v341
        %631 = vmatpush.msra.mxu0 %v340
        %632 = vmatpush.msra.mxu0 %v339
        %633 = vmatpush.msra.mxu0 %v338
        %634 = vmatpush.msra.mxu0 %v337
        %635 = vmatpush.msra.mxu0 %v336
        %636 = vmatpush.msra.mxu0 %v335
        %637 = vmatmul.f32.gmra.mxu0 %v214
        %v638 = vpop.f32.mrf.mxu0
        %v639 = vadd.f32 %v619, %v638
        %640 = vdwg.mxu0
        %641 = vmatpush.msra.mxu0 %v366
        %642 = vmatpush.msra.mxu0 %v365
        %643 = vmatpush.msra.mxu0 %v364
        %644 = vmatpush.msra.mxu0 %v363
        %645 = vmatpush.msra.mxu0 %v362
        %646 = vmatpush.msra.mxu0 %v361
        %647 = vmatpush.msra.mxu0 %v360
        %648 = vmatpush.msra.mxu0 %v359
        %649 = vmatpush.msra.mxu0 %v358
        %650 = vmatpush.msra.mxu0 %v357
        %651 = vmatpush.msra.mxu0 %v356
        %652 = vmatpush.msra.mxu0 %v355
        %653 = vmatpush.msra.mxu0 %v354
        %654 = vmatpush.msra.mxu0 %v353
        %655 = vmatpush.msra.mxu0 %v352
        %656 = vmatpush.msra.mxu0 %v351
        %657 = vmatmul.f32.gmra.mxu0 %v215
        %v658 = vpop.f32.mrf.mxu0
        %v659 = vadd.f32 %v639, %v658
        %660 = vdwg.mxu0
        %661 = vmatpush.msra.mxu0 %v382
        %662 = vmatpush.msra.mxu0 %v381
        %663 = vmatpush.msra.mxu0 %v380
        %664 = vmatpush.msra.mxu0 %v379
        %665 = vmatpush.msra.mxu0 %v378
        %666 = vmatpush.msra.mxu0 %v377
        %667 = vmatpush.msra.mxu0 %v376
        %668 = vmatpush.msra.mxu0 %v375
        %669 = vmatpush.msra.mxu0 %v374
        %670 = vmatpush.msra.mxu0 %v373
        %671 = vmatpush.msra.mxu0 %v372
        %672 = vmatpush.msra.mxu0 %v371
        %673 = vmatpush.msra.mxu0 %v370
        %674 = vmatpush.msra.mxu0 %v369
        %675 = vmatpush.msra.mxu0 %v368
        %676 = vmatpush.msra.mxu0 %v367
        %677 = vmatmul.f32.gmra.mxu0 %v216
        %v678 = vpop.f32.mrf.mxu0
        %v679 = vadd.f32 %v659, %v678
        %680 = vdwg.mxu0
        %681 = vmatpush.msra.mxu0 %v398
        %682 = vmatpush.msra.mxu0 %v397
        %683 = vmatpush.msra.mxu0 %v396
        %684 = vmatpush.msra.mxu0 %v395
        %685 = vmatpush.msra.mxu0 %v394
        %686 = vmatpush.msra.mxu0 %v393
        %687 = vmatpush.msra.mxu0 %v392
        %688 = vmatpush.msra.mxu0 %v391
        %689 = vmatpush.msra.mxu0 %v390
        %690 = vmatpush.msra.mxu0 %v389
        %691 = vmatpush.msra.mxu0 %v388
        %692 = vmatpush.msra.mxu0 %v387
        %693 = vmatpush.msra.mxu0 %v386
        %694 = vmatpush.msra.mxu0 %v385
        %695 = vmatpush.msra.mxu0 %v384
        %696 = vmatpush.msra.mxu0 %v383
        %697 = vmatmul.f32.gmra.mxu0 %v217
        %v698 = vpop.f32.mrf.mxu0
        %v699 = vadd.f32 %v679, %v698
        %700 = vdwg.mxu0
        %701 = vmatpush.msra.mxu0 %v414
        %702 = vmatpush.msra.mxu0 %v413
        %703 = vmatpush.msra.mxu0 %v412
        %704 = vmatpush.msra.mxu0 %v411
        %705 = vmatpush.msra.mxu0 %v410
        %706 = vmatpush.msra.mxu0 %v409
        %707 = vmatpush.msra.mxu0 %v408
        %708 = vmatpush.msra.mxu0 %v407
        %709 = vmatpush.msra.mxu0 %v406
        %710 = vmatpush.msra.mxu0 %v405
        %711 = vmatpush.msra.mxu0 %v404
        %712 = vmatpush.msra.mxu0 %v403
        %713 = vmatpush.msra.mxu0 %v402
        %714 = vmatpush.msra.mxu0 %v401
        %715 = vmatpush.msra.mxu0 %v400
        %716 = vmatpush.msra.mxu0 %v399
        %717 = vmatmul.f32.gmra.mxu0 %v218
        %v718 = vpop.f32.mrf.mxu0
        %v719 = vadd.f32 %v699, %v718
        %720 = vdwg.mxu0
        %721 = vmatpush.msra.mxu0 %v430
        %722 = vmatpush.msra.mxu0 %v429
        %723 = vmatpush.msra.mxu0 %v428
        %724 = vmatpush.msra.mxu0 %v427
        %725 = vmatpush.msra.mxu0 %v426
        %726 = vmatpush.msra.mxu0 %v425
        %727 = vmatpush.msra.mxu0 %v424
        %728 = vmatpush.msra.mxu0 %v423
        %729 = vmatpush.msra.mxu0 %v422
        %730 = vmatpush.msra.mxu0 %v421
        %731 = vmatpush.msra.mxu0 %v420
        %732 = vmatpush.msra.mxu0 %v419
        %733 = vmatpush.msra.mxu0 %v418
        %734 = vmatpush.msra.mxu0 %v417
        %735 = vmatpush.msra.mxu0 %v416
        %736 = vmatpush.msra.mxu0 %v415
        %737 = vmatmul.f32.gmra.mxu0 %v219
        %v738 = vpop.f32.mrf.mxu0
        %v739 = vadd.f32 %v719, %v738
        %740 = vdwg.mxu0
        %741 = vmatpush.msra.mxu0 %v446
        %742 = vmatpush.msra.mxu0 %v445
        %743 = vmatpush.msra.mxu0 %v444
        %744 = vmatpush.msra.mxu0 %v443
        %745 = vmatpush.msra.mxu0 %v442
        %746 = vmatpush.msra.mxu0 %v441
        %747 = vmatpush.msra.mxu0 %v440
        %748 = vmatpush.msra.mxu0 %v439
        %749 = vmatpush.msra.mxu0 %v438
        %750 = vmatpush.msra.mxu0 %v437
        %751 = vmatpush.msra.mxu0 %v436
        %752 = vmatpush.msra.mxu0 %v435
        %753 = vmatpush.msra.mxu0 %v434
        %754 = vmatpush.msra.mxu0 %v433
        %755 = vmatpush.msra.mxu0 %v432
        %756 = vmatpush.msra.mxu0 %v431
        %757 = vmatmul.f32.gmra.mxu0 %v220
        %v758 = vpop.f32.mrf.mxu0
        %v759 = vadd.f32 %v739, %v758
        %760 = vdwg.mxu0
        %761 = vmatpush.msra.mxu0 %v462
        %762 = vmatpush.msra.mxu0 %v461
        %763 = vmatpush.msra.mxu0 %v460
        %764 = vmatpush.msra.mxu0 %v459
        %765 = vmatpush.msra.mxu0 %v458
        %766 = vmatpush.msra.mxu0 %v457
        %767 = vmatpush.msra.mxu0 %v456
        %768 = vmatpush.msra.mxu0 %v455
        %769 = vmatpush.msra.mxu0 %v454
        %770 = vmatpush.msra.mxu0 %v453
        %771 = vmatpush.msra.mxu0 %v452
        %772 = vmatpush.msra.mxu0 %v451
        %773 = vmatpush.msra.mxu0 %v450
        %774 = vmatpush.msra.mxu0 %v449
        %775 = vmatpush.msra.mxu0 %v448
        %776 = vmatpush.msra.mxu0 %v447
        %777 = vmatmul.f32.gmra.mxu0 %v221
        %v778 = vpop.f32.mrf.mxu0
        %v779 = vadd.f32 %v759, %v778
        %780 = vdwg.mxu0
        %781 = vmatpush.msra.mxu0 %v478
        %782 = vmatpush.msra.mxu0 %v477
        %783 = vmatpush.msra.mxu0 %v476
        %784 = vmatpush.msra.mxu0 %v475
        %785 = vmatpush.msra.mxu0 %v474
        %786 = vmatpush.msra.mxu0 %v473
        %787 = vmatpush.msra.mxu0 %v472
        %788 = vmatpush.msra.mxu0 %v471
        %789 = vmatpush.msra.mxu0 %v470
        %790 = vmatpush.msra.mxu0 %v469
        %791 = vmatpush.msra.mxu0 %v468
        %792 = vmatpush.msra.mxu0 %v467
        %793 = vmatpush.msra.mxu0 %v466
        %794 = vmatpush.msra.mxu0 %v465
        %795 = vmatpush.msra.mxu0 %v464
        %796 = vmatpush.msra.mxu0 %v463
        %797 = vmatmul.f32.gmra.mxu0 %v222
        %v798 = vpop.f32.mrf.mxu0
        %v799 = vadd.f32 %v779, %v798
        %800 = vdwg.mxu0
        %801 = vst [vmem:[%s206] sm:$0xff] %v799
        %s802 = sand.u32 %s98, 1
        %s803 = scalar_lea.sflag [#allocation5], %s802
        %s804 = sand.u32 %s98, 1
        %s805 = smul.addr %s804, 8
        %s806 = scalar_lea.vmem [#allocation8], %s805
        // Predicated region
        $region41: #{tpu_custom_call.1} parent=31 // pred_check
          %p807 = pneg %p108
        $region42: #{tpu_custom_call.1} parent=31 // pred_check_branch
          %809 = sbr.rel (%p807) target = $region44
        $region43: #{tpu_custom_call.1} parent=31 // pred_region
          %811 = vsyncadd %s803, 0
          %s812 = smul.addr %s22, 8
          %s813 = scalar_lea.hbm %s3, %s812
          %s815 = sshll.u32 %s806, 4
          %s816 = int_to_ptr.vmem [resolvable:$true] %s815
          %s817 = sshll.u32 %s813, 4
          %s818 = int_to_ptr.hbm [resolvable:$true] %s817
          %820 = dma.vmem_to_hbm [thread:$0]  %s816, 128, %s818, %s803
        $region44: #{tpu_custom_call.1} parent=31 // pred_fallthru
          _
      $region32: #{tpu_custom_call.1} parent=5 // pred_fallthru
        _
      %p821 = scmp.le.s32.totalorder 2, %s17
      // Predicated region
      $region45: #{tpu_custom_call.1} parent=5 // pred_check
        %p822 = pneg %p821
      $region46: #{tpu_custom_call.1} parent=5 // pred_check_branch
        %824 = sbr.rel (%p822) target = $region48
      $region47: #{tpu_custom_call.1} parent=5 // pred_region
        %s825 = ssub.s32 %s17, 2
        // Predicated region
        $region49: #{tpu_custom_call.1} parent=47 // pred_check
          %p826 = pneg %p114
        $region50: #{tpu_custom_call.1} parent=47 // pred_check_branch
          %828 = sbr.rel (%p826) target = $region52
        $region51: #{tpu_custom_call.1} parent=47 // pred_region
          %s829 = sand.u32 %s99, 1
          %s830 = scalar_lea.sflag [#allocation5], %s829
          %s831 = sand.u32 %s99, 1
          %s832 = smul.addr %s831, 8
          %s833 = scalar_lea.vmem [#allocation8], %s832
          %835 = dma.done %s830, 128
        $region52: #{tpu_custom_call.1} parent=47 // pred_fallthru
          _
      $region48: #{tpu_custom_call.1} parent=5 // pred_fallthru
        _
    $region6: #{tpu_custom_call.1} parent=1 // loop_footer
      %s21 = sadd.s32 1, %s17
    $region7: #{tpu_custom_call.1} parent=1 // loop_footer_branch
      %16 = sbr.rel target = $region3
    $region8: #{tpu_custom_call.1} parent=1 // loop_exit
      _
    %836 = vsyncpa [#allocation4], 1
    %s837 = scalar_lea.sflag [#allocation4], 1
    %838 = vsyncpa %s837, 1
    %839 = vsyncpa [#allocation7], 1
    %840 = vsyncpa [#allocation5], 1
    %s841 = scalar_lea.sflag [#allocation5], 1
    %842 = vsyncpa %s841, 1

</llo_original>
